<compile_context>
chip_gen: v7x
topology: tpu7x:2x2x1
jax: 0.10.0
libtpu: 0.0.40
codegen_flags: <defaults>
</compile_context>

<pallas_src>
import jax
import jax.numpy as jnp
import numpy as np
from jax.experimental import pallas as pl
from jax.experimental.pallas import tpu as pltpu


# ----------------------------------------------------------------------------
# Kernel 1: per-(head, query-tile) projection + QQ^T softmax + relu(attn @ V)
# ----------------------------------------------------------------------------
def _mhdsc_attn_kernel(nf_q_ref, nf_all_ref, feat_ref, wq_ref, wv_ref,
                       attn_ref, ctx_ref):
    wq_h = wq_ref[...]        # (fea_dim, d_k)   current head's Q weights
    wv_h = wv_ref[...]        # (input_dim, d_v) current head's V weights

    # Lane-dense projections (K/V use all N rows, Q only the row tile).
    q = jnp.dot(nf_q_ref[...], wq_h, preferred_element_type=jnp.float32)    # (TM, d_k)
    k = jnp.dot(nf_all_ref[...], wq_h, preferred_element_type=jnp.float32)  # (N,  d_k)
    v = jnp.dot(feat_ref[...], wv_h, preferred_element_type=jnp.float32)    # (N,  d_v)

    # scores = q @ k^T without materializing an XLU transpose of k.
    scores = jax.lax.dot_general(q, k, (((1,), (1,)), ((), ())),
                                 preferred_element_type=jnp.float32)        # (TM, N)

    # Row-complete, max-subtracted softmax; divide moved to the EUP slot.
    m = jnp.max(scores, axis=-1, keepdims=True)
    e = jnp.exp(scores - m)
    attn = e * pl.reciprocal(jnp.sum(e, axis=-1, keepdims=True), approx=True)

    ctx = jnp.maximum(jnp.dot(attn, v, preferred_element_type=jnp.float32), 0.0)

    attn_ref[...] = attn       # (TM, N)  lane-dense store
    ctx_ref[...] = ctx         # (TM, d_v)


# ----------------------------------------------------------------------------
# Kernel 2: fc1 / fc2 with relu + residual connections (row-tiled)
# ----------------------------------------------------------------------------
def _mhdsc_ffn_kernel(ctxf_ref, feat_ref, w1_ref, w2_ref, out_ref):
    x = ctxf_ref[...]          # (TM, H*d_v)
    f = feat_ref[...]          # (TM, input_dim)
    h1 = jnp.maximum(
        jnp.dot(x, w1_ref[...], preferred_element_type=jnp.float32), 0.0) + f
    h2 = jnp.maximum(
        jnp.dot(h1, w2_ref[...], preferred_element_type=jnp.float32), 0.0) + h1
    out_ref[...] = h2


# ----------------------------------------------------------------------------
# Tiling helper: largest row tile whose double-buffered output block stays
# well inside the default scoped VMEM (sized conservatively for v7x).
# ----------------------------------------------------------------------------
def _pick_row_tile(n, bytes_per_row, vmem_budget_bytes=8 << 20):
    if n % 8 != 0 or 2 * n * bytes_per_row <= vmem_budget_bytes:
        return n                                # single full block is legal
    for tm in (1024, 512, 256, 128, 64, 32, 16, 8):
        if n % tm == 0 and 2 * tm * bytes_per_row <= vmem_budget_bytes:
            return tm
    return n


# ----------------------------------------------------------------------------
# Wrapper
# ----------------------------------------------------------------------------
def mhdsc_forward(new_fe, features, wq, wv, wfc1, wfc2, *, n_heads, q_tile=None):
    new_fe = new_fe.astype(jnp.float32)
    features = features.astype(jnp.float32)
    N, fea_dim = new_fe.shape
    input_dim = features.shape[1]
    d_k = wq.shape[1] // n_heads
    d_v = wv.shape[1] // n_heads

    # Head-major weight slabs: each head's weights arrive as one contiguous
    # BlockSpec block (no narrow column slices inside the kernel).
    wq3 = wq.reshape(fea_dim, n_heads, d_k).transpose(1, 0, 2)    # (H, fea_dim, d_k)
    wv3 = wv.reshape(input_dim, n_heads, d_v).transpose(1, 0, 2)  # (H, input_dim, d_v)

    tm = q_tile if q_tile is not None else _pick_row_tile(N, N * 4)
    assert N % tm == 0, "query tile must divide N"
    n_q_tiles = N // tm
    # NOTE: for very large N the full key/value rows should also be tiled
    # (flash-style online softmax); at these shapes they fit VMEM comfortably
    # and their constant index_map means they are DMA'd only once.

    attn, ctx = pl.pallas_call(
        _mhdsc_attn_kernel,
        grid=(n_heads, n_q_tiles),
        in_specs=[
            pl.BlockSpec((tm, fea_dim), lambda h, j: (j, 0)),            # query rows
            pl.BlockSpec((N, fea_dim), lambda h, j: (0, 0)),             # all rows (keys)
            pl.BlockSpec((N, input_dim), lambda h, j: (0, 0)),           # all rows (values)
            pl.BlockSpec((None, fea_dim, d_k), lambda h, j: (h, 0, 0)),  # W_Q[h]
            pl.BlockSpec((None, input_dim, d_v), lambda h, j: (h, 0, 0)),# W_V[h]
        ],
        out_specs=(
            pl.BlockSpec((None, tm, N), lambda h, j: (h, j, 0)),         # attn
            pl.BlockSpec((None, tm, d_v), lambda h, j: (h, j, 0)),       # context
        ),
        out_shape=(
            jax.ShapeDtypeStruct((n_heads, N, N), jnp.float32),
            jax.ShapeDtypeStruct((n_heads, N, d_v), jnp.float32),
        ),
        compiler_params=pltpu.CompilerParams(
            dimension_semantics=("parallel", "parallel")),
    )(new_fe, new_fe, features, wq3, wv3)

    # Exact PyTorch `context.transpose(1, 2).reshape(-1, H*d_v)` semantics
    # (head-leading context => token-interleaving permutation; tiny tensor).
    ctx_flat = jnp.transpose(ctx, (0, 2, 1)).reshape(N, n_heads * d_v)

    tm2 = _pick_row_tile(N, input_dim * 4)
    out = pl.pallas_call(
        _mhdsc_ffn_kernel,
        grid=(N // tm2,),
        in_specs=[
            pl.BlockSpec((tm2, n_heads * d_v), lambda i: (i, 0)),
            pl.BlockSpec((tm2, input_dim), lambda i: (i, 0)),
            pl.BlockSpec((n_heads * d_v, input_dim), lambda i: (0, 0)),
            pl.BlockSpec((input_dim, input_dim), lambda i: (0, 0)),
        ],
        out_specs=pl.BlockSpec((tm2, input_dim), lambda i: (i, 0)),
        out_shape=jax.ShapeDtypeStruct((N, input_dim), jnp.float32),
        compiler_params=pltpu.CompilerParams(dimension_semantics=("parallel",)),
    )(ctx_flat, features, wfc1, wfc2)

    return out, attn, ctx


# ----------------------------------------------------------------------------
# Pure-JAX reference (mirrors the PyTorch forward exactly)
# ----------------------------------------------------------------------------
def mhdsc_reference(new_fe, features, wq, wv, wfc1, wfc2, *, n_heads):
    N = new_fe.shape[0]
    d_k = wq.shape[1] // n_heads
    d_v = wv.shape[1] // n_heads
    Q = (new_fe @ wq).reshape(N, n_heads, d_k).transpose(1, 0, 2)
    V = (features @ wv).reshape(N, n_heads, d_v).transpose(1, 0, 2)
    scores = jnp.einsum('hnd,hmd->hnm', Q, Q)
    attn = jax.nn.softmax(scores, axis=-1)
    ctx = jax.nn.relu(jnp.einsum('hnm,hmd->hnd', attn, V))
    out0 = jnp.transpose(ctx, (0, 2, 1)).reshape(N, n_heads * d_v)
    o1 = jax.nn.relu(out0 @ wfc1) + features
    o2 = jax.nn.relu(o1 @ wfc2) + o1
    return o2, attn, ctx


if __name__ == "__main__":
    # Shapes consistent with MHDSC(fea_dim=32, input_dim=32, n_head_gc=4,
    # n_clusters=4, drop_out_rating=0.1) applied to N=128 nodes.
    N = 128
    fea_dim = 32
    input_dim = 32
    n_heads = 4
    n_clusters = 4
    d_k = input_dim // n_heads      # 8
    d_v = n_clusters                # 4

    key = jax.random.PRNGKey(0)
    k1, k2, k3, k4, k5, k6 = jax.random.split(key, 6)

    new_fe = jax.random.normal(k1, (N, fea_dim), dtype=jnp.float32)
    features = jax.random.normal(k2, (N, input_dim), dtype=jnp.float32)

    # Weights stored in (in, out) layout so kernels compute x @ W directly
    # (equivalent to PyTorch's x @ W_linear.weight.T).
    wq = 0.1 * jax.random.normal(k3, (fea_dim, n_heads * d_k), dtype=jnp.float32)
    wv = 0.1 * jax.random.normal(k4, (input_dim, n_heads * d_v), dtype=jnp.float32)
    wfc1 = 0.1 * jax.random.normal(k5, (n_heads * d_v, input_dim), dtype=jnp.float32)
    wfc2 = 0.1 * jax.random.normal(k6, (input_dim, input_dim), dtype=jnp.float32)

    # q_tile=64 exercises the (head, query-tile) grid: grid = (4, 2).
    out, attn, ctx = mhdsc_forward(new_fe, features, wq, wv, wfc1, wfc2,
                                   n_heads=n_heads, q_tile=64)
    jax.block_until_ready((out, attn, ctx))

    out_r, attn_r, ctx_r = mhdsc_reference(new_fe, features, wq, wv, wfc1, wfc2,
                                           n_heads=n_heads)
    # Tolerances account for pl.reciprocal(..., approx=True) in the softmax.
    np.testing.assert_allclose(np.asarray(attn), np.asarray(attn_r),
                               rtol=1e-2, atol=1e-3)
    np.testing.assert_allclose(np.asarray(ctx), np.asarray(ctx_r),
                               rtol=1e-2, atol=1e-3)
    np.testing.assert_allclose(np.asarray(out), np.asarray(out_r),
                               rtol=1e-2, atol=1e-3)

    print("KERNEL_OK")
</pallas_src>

<mosaic_0001>
module attributes {stable_mosaic.version = 11 : i64} {
  func.func @_mhdsc_attn_kernel(%arg0: i32, %arg1: i32, %arg2: memref<64x32xf32, #tpu.memory_space<vmem>>, %arg3: memref<128x32xf32, #tpu.memory_space<vmem>>, %arg4: memref<128x32xf32, #tpu.memory_space<vmem>>, %arg5: memref<1x32x8xf32, #tpu.memory_space<vmem>>, %arg6: memref<1x32x4xf32, #tpu.memory_space<vmem>>, %arg7: memref<1x64x128xf32, #tpu.memory_space<vmem>>, %arg8: memref<1x64x4xf32, #tpu.memory_space<vmem>>) attributes {dimension_semantics = [#tpu.dimension_semantics<parallel>, #tpu.dimension_semantics<parallel>], iteration_bounds = array<i64: 4, 2>, scalar_prefetch = 0 : i64, scratch_operands = 0 : i64, tpu.core_type = #tpu.core_type<tc>, window_params = [{transform_indices = @transform_0, window_bounds = array<i64: 64, 32>}, {pipeline_mode = #tpu.pipeline_mode<synchronous>, transform_indices = @transform_1, window_bounds = array<i64: 128, 32>}, {pipeline_mode = #tpu.pipeline_mode<synchronous>, transform_indices = @transform_2, window_bounds = array<i64: 128, 32>}, {transform_indices = @transform_3, window_bounds = array<i64: 1, 32, 8>}, {transform_indices = @transform_4, window_bounds = array<i64: 1, 32, 4>}, {transform_indices = @transform_5, window_bounds = array<i64: 1, 64, 128>}, {transform_indices = @transform_6, window_bounds = array<i64: 1, 64, 4>}]} {
    %c0 = arith.constant 0 : index
    %c0_0 = arith.constant 0 : index
    %c0_1 = arith.constant 0 : index
    %0 = vector.load %arg5[%c0, %c0_0, %c0_1] : memref<1x32x8xf32, #tpu.memory_space<vmem>>, vector<1x32x8xf32>
    %1 = vector.shape_cast %0 : vector<1x32x8xf32> to vector<32x8xf32>
    %c0_2 = arith.constant 0 : index
    %c0_3 = arith.constant 0 : index
    %c0_4 = arith.constant 0 : index
    %2 = vector.load %arg6[%c0_2, %c0_3, %c0_4] : memref<1x32x4xf32, #tpu.memory_space<vmem>>, vector<1x32x4xf32>
    %3 = vector.shape_cast %2 : vector<1x32x4xf32> to vector<32x4xf32>
    %c0_5 = arith.constant 0 : index
    %c0_6 = arith.constant 0 : index
    %4 = vector.load %arg2[%c0_5, %c0_6] : memref<64x32xf32, #tpu.memory_space<vmem>>, vector<64x32xf32>
    %cst = arith.constant dense<0.000000e+00> : vector<64x8xf32>
    %5 = tpu.matmul %4, %1, %cst {dimension_numbers = #tpu.dot_dimension_numbers<[1], [0], [0], [1], [0, 0, 1, 1], [], []>} : vector<64x32xf32>, vector<32x8xf32>, vector<64x8xf32> -> vector<64x8xf32>
    %c0_7 = arith.constant 0 : index
    %c0_8 = arith.constant 0 : index
    %6 = vector.load %arg3[%c0_7, %c0_8] : memref<128x32xf32, #tpu.memory_space<vmem>>, vector<128x32xf32>
    %cst_9 = arith.constant dense<0.000000e+00> : vector<128x8xf32>
    %7 = tpu.matmul %6, %1, %cst_9 {dimension_numbers = #tpu.dot_dimension_numbers<[1], [0], [0], [1], [0, 0, 1, 1], [], []>} : vector<128x32xf32>, vector<32x8xf32>, vector<128x8xf32> -> vector<128x8xf32>
    %c0_10 = arith.constant 0 : index
    %c0_11 = arith.constant 0 : index
    %8 = vector.load %arg4[%c0_10, %c0_11] : memref<128x32xf32, #tpu.memory_space<vmem>>, vector<128x32xf32>
    %cst_12 = arith.constant dense<0.000000e+00> : vector<128x4xf32>
    %9 = tpu.matmul %8, %3, %cst_12 {dimension_numbers = #tpu.dot_dimension_numbers<[1], [0], [0], [1], [0, 0, 1, 1], [], []>} : vector<128x32xf32>, vector<32x4xf32>, vector<128x4xf32> -> vector<128x4xf32>
    %cst_13 = arith.constant dense<0.000000e+00> : vector<64x128xf32>
    %10 = tpu.matmul %5, %7, %cst_13 {dimension_numbers = #tpu.dot_dimension_numbers<[1], [1], [0], [0], [0, 0, 1, 0], [], []>} : vector<64x8xf32>, vector<128x8xf32>, vector<64x128xf32> -> vector<64x128xf32>
    %cst_14 = arith.constant dense<0xFF800000> : vector<64xf32>
    %11 = vector.multi_reduction <maximumf>, %10, %cst_14 [1] : vector<64x128xf32> to vector<64xf32>
    %12 = vector.shape_cast %11 : vector<64xf32> to vector<64x1xf32>
    %13 = vector.broadcast %12 : vector<64x1xf32> to vector<64x128xf32>
    %14 = arith.subf %10, %13 : vector<64x128xf32>
    %15 = math.exp %14 : vector<64x128xf32>
    %cst_15 = arith.constant dense<0.000000e+00> : vector<64xf32>
    %16 = vector.multi_reduction <add>, %15, %cst_15 [1] : vector<64x128xf32> to vector<64xf32>
    %17 = vector.shape_cast %16 : vector<64xf32> to vector<64x1xf32>
    %18 = tpu.reciprocal %17 {approx = true} : vector<64x1xf32> -> vector<64x1xf32>
    %19 = vector.broadcast %18 : vector<64x1xf32> to vector<64x128xf32>
    %20 = arith.mulf %15, %19 : vector<64x128xf32>
    %cst_16 = arith.constant dense<0.000000e+00> : vector<64x4xf32>
    %21 = tpu.matmul %20, %9, %cst_16 {dimension_numbers = #tpu.dot_dimension_numbers<[1], [0], [0], [1], [0, 0, 1, 1], [], []>} : vector<64x128xf32>, vector<128x4xf32>, vector<64x4xf32> -> vector<64x4xf32>
    %cst_17 = arith.constant 0.000000e+00 : f32
    %22 = vector.broadcast %cst_17 : f32 to vector<64x4xf32>
    %23 = arith.maximumf %21, %22 : vector<64x4xf32>
    %c0_18 = arith.constant 0 : index
    %c0_19 = arith.constant 0 : index
    %c0_20 = arith.constant 0 : index
    %24 = vector.load %arg7[%c0_18, %c0_19, %c0_20] : memref<1x64x128xf32, #tpu.memory_space<vmem>>, vector<1x64x128xf32>
    %25 = vector.shape_cast %24 : vector<1x64x128xf32> to vector<64x128xf32>
    %26 = vector.shape_cast %20 : vector<64x128xf32> to vector<1x64x128xf32>
    tpu.vector_store %arg7[%c0_18, %c0_19, %c0_20], %26 {strides = array<i32>} : memref<1x64x128xf32, #tpu.memory_space<vmem>>, vector<1x64x128xf32>,
    %c0_21 = arith.constant 0 : index
    %c0_22 = arith.constant 0 : index
    %c0_23 = arith.constant 0 : index
    %27 = vector.load %arg8[%c0_21, %c0_22, %c0_23] : memref<1x64x4xf32, #tpu.memory_space<vmem>>, vector<1x64x4xf32>
    %28 = vector.shape_cast %27 : vector<1x64x4xf32> to vector<64x4xf32>
    %29 = vector.shape_cast %23 : vector<64x4xf32> to vector<1x64x4xf32>
    tpu.vector_store %arg8[%c0_21, %c0_22, %c0_23], %29 {strides = array<i32>} : memref<1x64x4xf32, #tpu.memory_space<vmem>>, vector<1x64x4xf32>,
    return
  }
  func.func @transform_0(%arg0: i32, %arg1: i32) -> (i32, i32) {
    %c0_i32 = arith.constant 0 : i32
    %c0_i32_0 = arith.constant 0 : i32
    return %arg1, %c0_i32 : i32, i32
  }
  func.func @transform_1(%arg0: i32, %arg1: i32) -> (i32, i32) {
    %c0_i32 = arith.constant 0 : i32
    %c0_i32_0 = arith.constant 0 : i32
    %c0_i32_1 = arith.constant 0 : i32
    return %c0_i32, %c0_i32_0 : i32, i32
  }
  func.func @transform_2(%arg0: i32, %arg1: i32) -> (i32, i32) {
    %c0_i32 = arith.constant 0 : i32
    %c0_i32_0 = arith.constant 0 : i32
    %c0_i32_1 = arith.constant 0 : i32
    return %c0_i32, %c0_i32_0 : i32, i32
  }
  func.func @transform_3(%arg0: i32, %arg1: i32) -> (i32, i32, i32) {
    %c0_i32 = arith.constant 0 : i32
    %c0_i32_0 = arith.constant 0 : i32
    %c0_i32_1 = arith.constant 0 : i32
    return %arg0, %c0_i32, %c0_i32_0 : i32, i32, i32
  }
  func.func @transform_4(%arg0: i32, %arg1: i32) -> (i32, i32, i32) {
    %c0_i32 = arith.constant 0 : i32
    %c0_i32_0 = arith.constant 0 : i32
    %c0_i32_1 = arith.constant 0 : i32
    return %arg0, %c0_i32, %c0_i32_0 : i32, i32, i32
  }
  func.func @transform_5(%arg0: i32, %arg1: i32) -> (i32, i32, i32) {
    %c0_i32 = arith.constant 0 : i32
    %c0_i32_0 = arith.constant 0 : i32
    return %arg0, %arg1, %c0_i32 : i32, i32, i32
  }
  func.func @transform_6(%arg0: i32, %arg1: i32) -> (i32, i32, i32) {
    %c0_i32 = arith.constant 0 : i32
    %c0_i32_0 = arith.constant 0 : i32
    return %arg0, %arg1, %c0_i32 : i32, i32, i32
  }
}

</mosaic_0001>

<llo_original>
// kernel: tpu_custom_call.1
$region0: #{tpu_custom_call.1}
  #allocation0 [shape = 'u32[]', space=smem, size = 0x4, offset = 0x4, fixed_abs, tag = 'smem constant byte address 0x4 - core index']
  #allocation1 [shape = 'u32[144,128]{1,0:T(1,128)}', space=vmem, size = 0x12000, scoped, tag = 'internal scratch']
  %s0 = inlined_call_operand.vmem [shape: f32[128,32], index: 0, kind: input, shape index: {}]
  %s1 = inlined_call_operand.vmem [shape: f32[128,32], index: 1, kind: input, shape index: {}]
  %s2 = inlined_call_operand.vmem [shape: f32[128,32], index: 2, kind: input, shape index: {}]
  %s3 = inlined_call_operand.vmem [shape: f32[4,32,8], index: 3, kind: input, shape index: {}]
  %s4 = inlined_call_operand.vmem [shape: f32[4,32,4], index: 4, kind: input, shape index: {}]
  %s5 = inlined_call_operand.hbm [shape: f32[4,128,128], index: 5, kind: output, shape index: {0}]
  %s6 = inlined_call_operand.vmem [shape: f32[4,128,4], index: 6, kind: output, shape index: {1}]
  %7 = xla_tuple %s5, %s6
  %s8 = sld [smem:[#allocation0]]
  $region61: #{tpu_custom_call.1} parent=0
    _
  %s10 = ssub.s32 1, %s8
  %s11 = scalar_select 0, %s10, %s8
  $region1: #{tpu_custom_call.1} parent=0
    #allocation2 [shape = 'u8[65536]{0}', space=vmem, size = 0x10000, scoped, tag = 'output window, operand 0']
    #allocation3 [shape = 's32[2]{0}', space=sflag, size = 0x8, scoped, tag = 'scoped memory for tpu_custom_call.1']
    %12 = vsyncpa [#allocation3], 0
    %s13 = scalar_lea.sflag [#allocation3], 1
    %14 = vsyncpa %s13, 0
    loop: start=0, step=1, limit=10
    $region2: #{tpu_custom_call.1} parent=1 // loop_pre_header
      _
    $region3: #{tpu_custom_call.1} parent=1 // loop_header
      %s16 = sphi 0, %s20
      %p17 = scmp.ge.s32.totalorder %s16, 10
      %s23 = sphi 0, %s35
      %s24 = sphi 0, %s31
      %s25 = sphi 0, %s23
      %s26 = sphi 0, %s24
      %s27 = sphi 0, %s25
      %s28 = sphi 0, %s26
      %s38 = sphi 0, %s40
      %s41 = sphi 0, %s38
      %s42 = sphi 0, %s41
      %s58 = sphi 0, %s42
      %s62 = sphi 0, %s62
      %s64 = sphi 0, %s62
      %s65 = sphi 0, %s64
      %s79 = sphi 0, %s65
      %s83 = sphi 0, %s83
      %s85 = sphi 0, %s83
      %s86 = sphi 0, %s85
      %s100 = sphi 0, %s86
      %s106 = sphi 0, %s108
      %s109 = sphi 0, %s106
      %s110 = sphi 0, %s109
      %s126 = sphi 0, %s110
      %s132 = sphi 0, %s134
      %s135 = sphi 0, %s132
      %s136 = sphi 0, %s135
      %s152 = sphi 0, %s136
      %s160 = sphi 0, %s162
      %s163 = sphi 0, %s160
      %s164 = sphi 0, %s163
      %s180 = sphi 0, %s164
      %s188 = sphi 0, %s190
      %s191 = sphi 0, %s188
      %s192 = sphi 0, %s191
      %s208 = sphi 0, %s192
    $region4: #{tpu_custom_call.1} parent=1 // loop_header_branch
      %19 = sbr.rel (%p17) target = $region8
    $region5: #{tpu_custom_call.1} parent=1 // loop_body
      %s21 = ssub.s32 %s16, 1
      %s22 = ssub.s32 %s16, 2
      %s29 = sadd.s32 1, %s24
      %p30 = scmp.ge.s32.totalorder %s29, 2
      %s31 = scalar_select %p30, 0, %s29
      %s32 = sadd.s32 1, %s23
      %s33 = scalar_select %p30, %s32, %s23
      %p34 = scmp.ge.s32.totalorder %s33, 4
      %s35 = scalar_select %p34, 0, %s33
      %s36 = ssub.s32 %s24, %s31
      %p37 = scmp.eq.s32.totalorder %s36, 0
      %s39 = sadd.s32 %s38, 1
      %s40 = scalar_select %p37, %s38, %s39
      %p43 = pneg %p37
      %p44 = scmp.eq.s32.totalorder %s16, 7
      %p45 = por %p43, %p44
      %p46 = scmp.ne.s32.totalorder %s38, %s41
      %p47 = scmp.eq.s32.totalorder %s16, 0
      %p48 = por %p46, %p47
      %p49 = scmp.ne.s32.totalorder %s38, %s41
      %p50 = scmp.eq.s32.totalorder %s21, 7
      %p51 = por %p49, %p50
      %p52 = scmp.ne.s32.totalorder %s41, %s42
      %p53 = scmp.eq.s32.totalorder %s21, 0
      %p54 = por %p52, %p53
      %p55 = scmp.ne.s32.totalorder %s41, %s42
      %p56 = scmp.eq.s32.totalorder %s22, 7
      %p57 = por %p55, %p56
      %p59 = scmp.ne.s32.totalorder %s42, %s58
      %p60 = scmp.eq.s32.totalorder %s22, 0
      %p61 = por %p59, %p60
      %s63 = sadd.s32 %s62, 1
      %p66 = scmp.eq.s32.totalorder %s16, 7
      %p67 = scmp.ne.s32.totalorder %s62, %s64
      %p68 = scmp.eq.s32.totalorder %s16, 0
      %p69 = por %p67, %p68
      %p70 = scmp.ne.s32.totalorder %s62, %s64
      %p71 = scmp.eq.s32.totalorder %s21, 7
      %p72 = por %p70, %p71
      %p73 = scmp.ne.s32.totalorder %s64, %s65
      %p74 = scmp.eq.s32.totalorder %s21, 0
      %p75 = por %p73, %p74
      %p76 = scmp.ne.s32.totalorder %s64, %s65
      %p77 = scmp.eq.s32.totalorder %s22, 7
      %p78 = por %p76, %p77
      %p80 = scmp.ne.s32.totalorder %s65, %s79
      %p81 = scmp.eq.s32.totalorder %s22, 0
      %p82 = por %p80, %p81
      %s84 = sadd.s32 %s83, 1
      %p87 = scmp.eq.s32.totalorder %s16, 7
      %p88 = scmp.ne.s32.totalorder %s83, %s85
      %p89 = scmp.eq.s32.totalorder %s16, 0
      %p90 = por %p88, %p89
      %p91 = scmp.ne.s32.totalorder %s83, %s85
      %p92 = scmp.eq.s32.totalorder %s21, 7
      %p93 = por %p91, %p92
      %p94 = scmp.ne.s32.totalorder %s85, %s86
      %p95 = scmp.eq.s32.totalorder %s21, 0
      %p96 = por %p94, %p95
      %p97 = scmp.ne.s32.totalorder %s85, %s86
      %p98 = scmp.eq.s32.totalorder %s22, 7
      %p99 = por %p97, %p98
      %p101 = scmp.ne.s32.totalorder %s86, %s100
      %p102 = scmp.eq.s32.totalorder %s22, 0
      %p103 = por %p101, %p102
      %s104 = ssub.s32 %s23, %s35
      %p105 = scmp.eq.s32.totalorder %s104, 0
      %s107 = sadd.s32 %s106, 1
      %s108 = scalar_select %p105, %s106, %s107
      %p111 = pneg %p105
      %p112 = scmp.eq.s32.totalorder %s16, 7
      %p113 = por %p111, %p112
      %p114 = scmp.ne.s32.totalorder %s106, %s109
      %p115 = scmp.eq.s32.totalorder %s16, 0
      %p116 = por %p114, %p115
      %p117 = scmp.ne.s32.totalorder %s106, %s109
      %p118 = scmp.eq.s32.totalorder %s21, 7
      %p119 = por %p117, %p118
      %p120 = scmp.ne.s32.totalorder %s109, %s110
      %p121 = scmp.eq.s32.totalorder %s21, 0
      %p122 = por %p120, %p121
      %p123 = scmp.ne.s32.totalorder %s109, %s110
      %p124 = scmp.eq.s32.totalorder %s22, 7
      %p125 = por %p123, %p124
      %p127 = scmp.ne.s32.totalorder %s110, %s126
      %p128 = scmp.eq.s32.totalorder %s22, 0
      %p129 = por %p127, %p128
      %s130 = ssub.s32 %s23, %s35
      %p131 = scmp.eq.s32.totalorder %s130, 0
      %s133 = sadd.s32 %s132, 1
      %s134 = scalar_select %p131, %s132, %s133
      %p137 = pneg %p131
      %p138 = scmp.eq.s32.totalorder %s16, 7
      %p139 = por %p137, %p138
      %p140 = scmp.ne.s32.totalorder %s132, %s135
      %p141 = scmp.eq.s32.totalorder %s16, 0
      %p142 = por %p140, %p141
      %p143 = scmp.ne.s32.totalorder %s132, %s135
      %p144 = scmp.eq.s32.totalorder %s21, 7
      %p145 = por %p143, %p144
      %p146 = scmp.ne.s32.totalorder %s135, %s136
      %p147 = scmp.eq.s32.totalorder %s21, 0
      %p148 = por %p146, %p147
      %p149 = scmp.ne.s32.totalorder %s135, %s136
      %p150 = scmp.eq.s32.totalorder %s22, 7
      %p151 = por %p149, %p150
      %p153 = scmp.ne.s32.totalorder %s136, %s152
      %p154 = scmp.eq.s32.totalorder %s22, 0
      %p155 = por %p153, %p154
      %s156 = ssub.s32 %s23, %s35
      %s157 = ssub.s32 %s24, %s31
      %s158 = sor.u32 %s156, %s157
      %p159 = scmp.eq.s32.totalorder %s158, 0
      %s161 = sadd.s32 %s160, 1
      %s162 = scalar_select %p159, %s160, %s161
      %p165 = pneg %p159
      %p166 = scmp.eq.s32.totalorder %s16, 7
      %p167 = por %p165, %p166
      %p168 = scmp.ne.s32.totalorder %s160, %s163
      %p169 = scmp.eq.s32.totalorder %s16, 0
      %p170 = por %p168, %p169
      %p171 = scmp.ne.s32.totalorder %s160, %s163
      %p172 = scmp.eq.s32.totalorder %s21, 7
      %p173 = por %p171, %p172
      %p174 = scmp.ne.s32.totalorder %s163, %s164
      %p175 = scmp.eq.s32.totalorder %s21, 0
      %p176 = por %p174, %p175
      %p177 = scmp.ne.s32.totalorder %s163, %s164
      %p178 = scmp.eq.s32.totalorder %s22, 7
      %p179 = por %p177, %p178
      %p181 = scmp.ne.s32.totalorder %s164, %s180
      %p182 = scmp.eq.s32.totalorder %s22, 0
      %p183 = por %p181, %p182
      %s184 = ssub.s32 %s23, %s35
      %s185 = ssub.s32 %s24, %s31
      %s186 = sor.u32 %s184, %s185
      %p187 = scmp.eq.s32.totalorder %s186, 0
      %s189 = sadd.s32 %s188, 1
      %s190 = scalar_select %p187, %s188, %s189
      %p193 = pneg %p187
      %p194 = scmp.eq.s32.totalorder %s16, 7
      %p195 = por %p193, %p194
      %p196 = scmp.ne.s32.totalorder %s188, %s191
      %p197 = scmp.eq.s32.totalorder %s16, 0
      %p198 = por %p196, %p197
      %p199 = scmp.ne.s32.totalorder %s188, %s191
      %p200 = scmp.eq.s32.totalorder %s21, 7
      %p201 = por %p199, %p200
      %p202 = scmp.ne.s32.totalorder %s191, %s192
      %p203 = scmp.eq.s32.totalorder %s21, 0
      %p204 = por %p202, %p203
      %p205 = scmp.ne.s32.totalorder %s191, %s192
      %p206 = scmp.eq.s32.totalorder %s22, 7
      %p207 = por %p205, %p206
      %p209 = scmp.ne.s32.totalorder %s192, %s208
      %p210 = scmp.eq.s32.totalorder %s22, 0
      %p211 = por %p209, %p210
      %p212 = scmp.le.s32.totalorder 1, %s16
      %p213 = scmp.lt.s32.totalorder %s16, 9
      %p214 = pnand %p212, %p213
      %p215 = pneg %p214
      // Predicated region
      $region9: #{tpu_custom_call.1} parent=5 // pred_check
        _
      $region10: #{tpu_custom_call.1} parent=5 // pred_check_branch
        %217 = sbr.rel (%p214) target = $region12
      $region11: #{tpu_custom_call.1} parent=5 // pred_region
        %s218 = ssub.s32 %s16, 1
        // Predicated region
        $region13: #{tpu_custom_call.1} parent=11 // pred_check
          %p219 = pneg %p75
        $region14: #{tpu_custom_call.1} parent=11 // pred_check_branch
          %221 = sbr.rel (%p219) target = $region16
        $region15: #{tpu_custom_call.1} parent=11 // pred_region
          _
        $region16: #{tpu_custom_call.1} parent=11 // pred_fallthru
          _
        // Predicated region
        $region17: #{tpu_custom_call.1} parent=11 // pred_check
          %p222 = pneg %p96
        $region18: #{tpu_custom_call.1} parent=11 // pred_check_branch
          %224 = sbr.rel (%p222) target = $region20
        $region19: #{tpu_custom_call.1} parent=11 // pred_region
          _
        $region20: #{tpu_custom_call.1} parent=11 // pred_fallthru
          _
      $region12: #{tpu_custom_call.1} parent=5 // pred_fallthru
        _
      %p225 = scmp.lt.s32.totalorder %s16, 8
      // Predicated region
      $region21: #{tpu_custom_call.1} parent=5 // pred_check
        %p226 = pneg %p225
      $region22: #{tpu_custom_call.1} parent=5 // pred_check_branch
        %228 = sbr.rel (%p226) target = $region24
      $region23: #{tpu_custom_call.1} parent=5 // pred_region
        // Predicated region
        $region25: #{tpu_custom_call.1} parent=23 // pred_check
          %p229 = pneg %p48
        $region26: #{tpu_custom_call.1} parent=23 // pred_check_branch
          %231 = sbr.rel (%p229) target = $region28
        $region27: #{tpu_custom_call.1} parent=23 // pred_region
          %s232 = smul.u32 8, %s24
          %p233 = scmp.lt.s32.totalorder %s232, 15
          %s234 = scalar_select %p233, %s232, 15
          %s235 = smul.addr %s234, 8
          %s236 = scalar_lea.vmem %s0, %s235
          %s237 = smul.u32 8, %s24
        $region28: #{tpu_custom_call.1} parent=23 // pred_fallthru
          _
        // Predicated region
        $region29: #{tpu_custom_call.1} parent=23 // pred_check
          %p238 = pneg %p116
        $region30: #{tpu_custom_call.1} parent=23 // pred_check_branch
          %240 = sbr.rel (%p238) target = $region32
        $region31: #{tpu_custom_call.1} parent=23 // pred_region
          %p241 = scmp.lt.s32.totalorder %s23, 3
          %s242 = scalar_select %p241, %s23, 3
          %s243 = smul.addr %s242, 4
          %s244 = smul.addr %s243, 8
          %s245 = scalar_lea.vmem %s3, %s244
        $region32: #{tpu_custom_call.1} parent=23 // pred_fallthru
          _
        // Predicated region
        $region33: #{tpu_custom_call.1} parent=23 // pred_check
          %p246 = pneg %p142
        $region34: #{tpu_custom_call.1} parent=23 // pred_check_branch
          %248 = sbr.rel (%p246) target = $region36
        $region35: #{tpu_custom_call.1} parent=23 // pred_region
          %p249 = scmp.lt.s32.totalorder %s23, 3
          %s250 = scalar_select %p249, %s23, 3
          %s251 = smul.addr %s250, 4
          %s252 = smul.addr %s251, 8
          %s253 = scalar_lea.vmem %s4, %s252
        $region36: #{tpu_custom_call.1} parent=23 // pred_fallthru
          _
      $region24: #{tpu_custom_call.1} parent=5 // pred_fallthru
        _
      %p254 = scmp.le.s32.totalorder 1, %s16
      %p255 = scmp.lt.s32.totalorder %s16, 9
      %p256 = pnand %p254, %p255
      %p257 = pneg %p256
      // Predicated region
      $region37: #{tpu_custom_call.1} parent=5 // pred_check
        _
      $region38: #{tpu_custom_call.1} parent=5 // pred_check_branch
        %259 = sbr.rel (%p256) target = $region40
      $region39: #{tpu_custom_call.1} parent=5 // pred_region
        %s260 = ssub.s32 %s16, 1
        %s261 = smul.u32 8, %s26
        %p262 = scmp.lt.s32.totalorder %s261, 15
        %s263 = scalar_select %p262, %s261, 15
        %s264 = smul.addr %s263, 8
        %s265 = scalar_lea.vmem %s0, %s264
        %p266 = pneg %p54
        %p267 = pneg %p51
        %p268 = pneg %p75
        %p269 = pneg %p72
        %p270 = pneg %p96
        %p271 = pneg %p93
        %p272 = scmp.lt.s32.totalorder %s25, 3
        %s273 = scalar_select %p272, %s25, 3
        %s274 = smul.addr %s273, 4
        %s275 = smul.addr %s274, 8
        %s276 = scalar_lea.vmem %s3, %s275
        %p277 = pneg %p122
        %p278 = pneg %p119
        %p279 = scmp.lt.s32.totalorder %s25, 3
        %s280 = scalar_select %p279, %s25, 3
        %s281 = smul.addr %s280, 4
        %s282 = smul.addr %s281, 8
        %s283 = scalar_lea.vmem %s4, %s282
        %p284 = pneg %p148
        %p285 = pneg %p145
        %p286 = pneg %p176
        %p287 = pneg %p173
        %s288 = sand.u32 %s163, 1
        %s289 = scalar_lea.sflag [#allocation3], %s288
        %s290 = sand.u32 %s163, 1
        %s291 = smul.addr %s290, 64
        %s292 = scalar_lea.vmem [#allocation2], %s291
        %p293 = pneg %p204
        %p294 = pneg %p201
        %s295 = smul.u32 8, %s26
        %p296 = scmp.lt.s32.totalorder %s25, 3
        %s297 = scalar_select %p296, %s25, 3
        %p298 = scmp.lt.s32.totalorder %s295, 15
        %s299 = scalar_select %p298, %s295, 15
        %s300 = smul.addr %s297, 16
        %s301 = sadd.s32 %s299, %s300
        %s302 = smul.addr %s301, 8
        %s303 = scalar_lea.vmem %s6, %s302
        %s304 = smul.u32 8, %s26
        %p305 = scmp.lt.s32.totalorder %s304, 15
        %s306 = scalar_select %p305, %s304, 15
        %s307 = smul.addr %s306, 8
        %s308 = scalar_lea.vmem %s0, %s307
        %s309 = smul.u32 8, %s26
        %p310 = scmp.lt.s32.totalorder %s25, 3
        %s311 = scalar_select %p310, %s25, 3
        %s312 = smul.addr %s311, 4
        %s313 = smul.addr %s312, 8
        %s314 = scalar_lea.vmem %s3, %s313
        %p315 = scmp.lt.s32.totalorder %s25, 3
        %s316 = scalar_select %p315, %s25, 3
        %s317 = smul.addr %s316, 4
        %s318 = smul.addr %s317, 8
        %s319 = scalar_lea.vmem %s4, %s318
        %s320 = smul.u32 8, %s26
        %s321 = smul.u32 8, %s26
        %p322 = scmp.lt.s32.totalorder %s25, 3
        %s323 = scalar_select %p322, %s25, 3
        %p324 = scmp.lt.s32.totalorder %s321, 15
        %s325 = scalar_select %p324, %s321, 15
        %s326 = smul.addr %s323, 16
        %s327 = sadd.s32 %s325, %s326
        %s328 = smul.addr %s327, 8
        %s329 = scalar_lea.vmem %s6, %s328
        %s330 = smul.u32 8, %s26
        %v331 = vld [vmem:[%s314] sm:$0xff]
        %v332 = vld [vmem:[%s314 + $0x8] sm:$0xff]
        %v333 = vld [vmem:[%s314 + $0x10] sm:$0xff]
        %v334 = vld [vmem:[%s314 + $0x18] sm:$0xff]
        %v335 = vld [vmem:[%s319] sm:$0xff]
        %v336 = vld [vmem:[%s319 + $0x8] sm:$0xff]
        %v337 = vld [vmem:[%s319 + $0x10] sm:$0xff]
        %v338 = vld [vmem:[%s319 + $0x18] sm:$0xff]
        %v339 = vld [vmem:[%s308] sm:$0xff]
        %v340 = vld [vmem:[%s308 + $0x8] sm:$0xff]
        %v341 = vld [vmem:[%s308 + $0x10] sm:$0xff]
        %v342 = vld [vmem:[%s308 + $0x18] sm:$0xff]
        %v343 = vld [vmem:[%s308 + $0x20] sm:$0xff]
        %v344 = vld [vmem:[%s308 + $0x28] sm:$0xff]
        %v345 = vld [vmem:[%s308 + $0x30] sm:$0xff]
        %v346 = vld [vmem:[%s308 + $0x38] sm:$0xff]
        %vm347 = vcmask 261120
        %v349 = vsel %vm347, %v339, 0
        %v352 = vsel %vm347, %v340, 0
        %v355 = vsel %vm347, %v341, 0
        %v358 = vsel %vm347, %v342, 0
        %v361 = vsel %vm347, %v343, 0
        %v364 = vsel %vm347, %v344, 0
        %v367 = vsel %vm347, %v345, 0
        %v370 = vsel %vm347, %v346, 0
        %372 = vmatprep.subr.mxu0 0.0
        %373 = vmatpush1.msra.mxu0 %v331
        %374 = vmatprep.subr.mxu0 0.0
        %375 = vmatpush1.msra.mxu0 %v332
        %376 = vmatprep.subr.mxu0 0.0
        %377 = vmatpush1.msra.mxu0 %v333
        %378 = vmatprep.subr.mxu0 0.0
        %379 = vmatpush1.msra.mxu0 %v334
        %380 = vmatprep.subr.mxu0 0.0
        %381 = vmatpush1.msra.mxu0 0.0
        %382 = vmatprep.subr.mxu0 0.0
        %383 = vmatpush1.msra.mxu0 0.0
        %384 = vmatprep.subr.mxu0 0.0
        %385 = vmatpush1.msra.mxu0 0.0
        %386 = vmatprep.subr.mxu0 0.0
        %387 = vmatpush1.msra.mxu0 0.0
        %388 = vmatprep.subr.mxu0 0.0
        %389 = vmatpush1.msra.mxu0 0.0
        %390 = vmatprep.subr.mxu0 0.0
        %391 = vmatpush1.msra.mxu0 0.0
        %392 = vmatprep.subr.mxu0 0.0
        %393 = vmatpush1.msra.mxu0 0.0
        %394 = vmatprep.subr.mxu0 0.0
        %395 = vmatpush1.msra.mxu0 0.0
        %396 = vmatprep.subr.mxu0 0.0
        %397 = vmatpush1.msra.mxu0 0.0
        %398 = vmatprep.subr.mxu0 0.0
        %399 = vmatpush1.msra.mxu0 0.0
        %400 = vmatprep.subr.mxu0 0.0
        %401 = vmatpush1.msra.mxu0 0.0
        %402 = vmatprep.subr.mxu0 0.0
        %403 = vmatpush1.msra.mxu0 0.0
        %404 = vmatprep.subr.mxu0 0.0
        %405 = vmatpush1.msra.mxu0 0.0
        %406 = vmatprep.subr.mxu0 0.0
        %407 = vmatpush1.msra.mxu0 0.0
        %408 = vmatprep.subr.mxu0 0.0
        %409 = vmatpush1.msra.mxu0 0.0
        %410 = vmatprep.subr.mxu0 0.0
        %411 = vmatpush1.msra.mxu0 0.0
        %412 = vmatprep.subr.mxu0 0.0
        %413 = vmatpush1.msra.mxu0 0.0
        %414 = vmatprep.subr.mxu0 0.0
        %415 = vmatpush1.msra.mxu0 0.0
        %416 = vmatprep.subr.mxu0 0.0
        %417 = vmatpush1.msra.mxu0 0.0
        %418 = vmatprep.subr.mxu0 0.0
        %419 = vmatpush1.msra.mxu0 0.0
        %420 = vmatprep.subr.mxu0 0.0
        %421 = vmatpush1.msra.mxu0 0.0
        %422 = vmatprep.subr.mxu0 0.0
        %423 = vmatpush1.msra.mxu0 0.0
        %424 = vmatprep.subr.mxu0 0.0
        %425 = vmatpush1.msra.mxu0 0.0
        %426 = vmatprep.subr.mxu0 0.0
        %427 = vmatpush1.msra.mxu0 0.0
        %428 = vmatprep.subr.mxu0 0.0
        %429 = vmatpush1.msra.mxu0 0.0
        %430 = vmatprep.subr.mxu0 0.0
        %431 = vmatpush1.msra.mxu0 0.0
        %432 = vmatprep.subr.mxu0 0.0
        %433 = vmatpush1.msra.mxu0 0.0
        %434 = vmatprep.subr.mxu0 0.0
        %435 = vmatpush1.msra.mxu0 0.0
        %436 = vmatprep.mubr.f32.mxu0 0.0
        %437 = vmatmul.mubr.f32.gmra.mrb[0].mxu0 %v349
        %v438 = vpop.f32.mrb[0].mxu0
        %v439 = vadd.f32 0.0, %v438
        %v440 = vpop.f32.mrb[0].mxu0
        %441 = vmatprep.mubr.f32.mxu0 0.0
        %442 = vmatmul.mubr.f32.gmra.mrb[0].mxu0 %v352
        %v443 = vpop.f32.mrb[0].mxu0
        %v444 = vadd.f32 0.0, %v443
        %v445 = vpop.f32.mrb[0].mxu0
        %446 = vmatprep.mubr.f32.mxu0 0.0
        %447 = vmatmul.mubr.f32.gmra.mrb[0].mxu0 %v355
        %v448 = vpop.f32.mrb[0].mxu0
        %v449 = vadd.f32 0.0, %v448
        %v450 = vpop.f32.mrb[0].mxu0
        %451 = vmatprep.mubr.f32.mxu0 0.0
        %452 = vmatmul.mubr.f32.gmra.mrb[0].mxu0 %v358
        %v453 = vpop.f32.mrb[0].mxu0
        %v454 = vadd.f32 0.0, %v453
        %v455 = vpop.f32.mrb[0].mxu0
        %456 = vmatprep.mubr.f32.mxu0 0.0
        %457 = vmatmul.mubr.f32.gmra.mrb[0].mxu0 %v361
        %v458 = vpop.f32.mrb[0].mxu0
        %v459 = vadd.f32 0.0, %v458
        %v460 = vpop.f32.mrb[0].mxu0
        %461 = vmatprep.mubr.f32.mxu0 0.0
        %462 = vmatmul.mubr.f32.gmra.mrb[0].mxu0 %v364
        %v463 = vpop.f32.mrb[0].mxu0
        %v464 = vadd.f32 0.0, %v463
        %v465 = vpop.f32.mrb[0].mxu0
        %466 = vmatprep.mubr.f32.mxu0 0.0
        %467 = vmatmul.mubr.f32.gmra.mrb[0].mxu0 %v367
        %v468 = vpop.f32.mrb[0].mxu0
        %v469 = vadd.f32 0.0, %v468
        %v470 = vpop.f32.mrb[0].mxu0
        %471 = vmatprep.mubr.f32.mxu0 0.0
        %472 = vmatmul.mubr.f32.gmra.mrb[0].mxu0 %v370
        %v473 = vpop.f32.mrb[0].mxu0
        %v474 = vadd.f32 0.0, %v473
        %v475 = vpop.f32.mrb[0].mxu0
        %476 = vdwg.mxu0
        %v477 = vld [vmem:[%s1] sm:$0xff]
        %v478 = vld [vmem:[%s1 + $0x8] sm:$0xff]
        %v479 = vld [vmem:[%s1 + $0x10] sm:$0xff]
        %v480 = vld [vmem:[%s1 + $0x18] sm:$0xff]
        %v481 = vld [vmem:[%s1 + $0x20] sm:$0xff]
        %v482 = vld [vmem:[%s1 + $0x28] sm:$0xff]
        %v483 = vld [vmem:[%s1 + $0x30] sm:$0xff]
        %v484 = vld [vmem:[%s1 + $0x38] sm:$0xff]
        %v485 = vld [vmem:[%s1 + $0x40] sm:$0xff]
        %v486 = vld [vmem:[%s1 + $0x48] sm:$0xff]
        %v487 = vld [vmem:[%s1 + $0x50] sm:$0xff]
        %v488 = vld [vmem:[%s1 + $0x58] sm:$0xff]
        %v489 = vld [vmem:[%s1 + $0x60] sm:$0xff]
        %v490 = vld [vmem:[%s1 + $0x68] sm:$0xff]
        %v491 = vld [vmem:[%s1 + $0x70] sm:$0xff]
        %v492 = vld [vmem:[%s1 + $0x78] sm:$0xff]
        %v494 = vsel %vm347, %v477, 0
        %v497 = vsel %vm347, %v478, 0
        %v500 = vsel %vm347, %v479, 0
        %v503 = vsel %vm347, %v480, 0
        %v506 = vsel %vm347, %v481, 0
        %v509 = vsel %vm347, %v482, 0
        %v512 = vsel %vm347, %v483, 0
        %v515 = vsel %vm347, %v484, 0
        %v518 = vsel %vm347, %v485, 0
        %v521 = vsel %vm347, %v486, 0
        %v524 = vsel %vm347, %v487, 0
        %v527 = vsel %vm347, %v488, 0
        %v530 = vsel %vm347, %v489, 0
        %v533 = vsel %vm347, %v490, 0
        %v536 = vsel %vm347, %v491, 0
        %v539 = vsel %vm347, %v492, 0
        %541 = vmatprep.subr.mxu0 0.0
        %542 = vmatpush1.msra.mxu0 %v331
        %543 = vmatprep.subr.mxu0 0.0
        %544 = vmatpush1.msra.mxu0 %v332
        %545 = vmatprep.subr.mxu0 0.0
        %546 = vmatpush1.msra.mxu0 %v333
        %547 = vmatprep.subr.mxu0 0.0
        %548 = vmatpush1.msra.mxu0 %v334
        %549 = vmatprep.subr.mxu0 0.0
        %550 = vmatpush1.msra.mxu0 0.0
        %551 = vmatprep.subr.mxu0 0.0
        %552 = vmatpush1.msra.mxu0 0.0
        %553 = vmatprep.subr.mxu0 0.0
        %554 = vmatpush1.msra.mxu0 0.0
        %555 = vmatprep.subr.mxu0 0.0
        %556 = vmatpush1.msra.mxu0 0.0
        %557 = vmatprep.subr.mxu0 0.0
        %558 = vmatpush1.msra.mxu0 0.0
        %559 = vmatprep.subr.mxu0 0.0
        %560 = vmatpush1.msra.mxu0 0.0
        %561 = vmatprep.subr.mxu0 0.0
        %562 = vmatpush1.msra.mxu0 0.0
        %563 = vmatprep.subr.mxu0 0.0
        %564 = vmatpush1.msra.mxu0 0.0
        %565 = vmatprep.subr.mxu0 0.0
        %566 = vmatpush1.msra.mxu0 0.0
        %567 = vmatprep.subr.mxu0 0.0
        %568 = vmatpush1.msra.mxu0 0.0
        %569 = vmatprep.subr.mxu0 0.0
        %570 = vmatpush1.msra.mxu0 0.0
        %571 = vmatprep.subr.mxu0 0.0
        %572 = vmatpush1.msra.mxu0 0.0
        %573 = vmatprep.subr.mxu0 0.0
        %574 = vmatpush1.msra.mxu0 0.0
        %575 = vmatprep.subr.mxu0 0.0
        %576 = vmatpush1.msra.mxu0 0.0
        %577 = vmatprep.subr.mxu0 0.0
        %578 = vmatpush1.msra.mxu0 0.0
        %579 = vmatprep.subr.mxu0 0.0
        %580 = vmatpush1.msra.mxu0 0.0
        %581 = vmatprep.subr.mxu0 0.0
        %582 = vmatpush1.msra.mxu0 0.0
        %583 = vmatprep.subr.mxu0 0.0
        %584 = vmatpush1.msra.mxu0 0.0
        %585 = vmatprep.subr.mxu0 0.0
        %586 = vmatpush1.msra.mxu0 0.0
        %587 = vmatprep.subr.mxu0 0.0
        %588 = vmatpush1.msra.mxu0 0.0
        %589 = vmatprep.subr.mxu0 0.0
        %590 = vmatpush1.msra.mxu0 0.0
        %591 = vmatprep.subr.mxu0 0.0
        %592 = vmatpush1.msra.mxu0 0.0
        %593 = vmatprep.subr.mxu0 0.0
        %594 = vmatpush1.msra.mxu0 0.0
        %595 = vmatprep.subr.mxu0 0.0
        %596 = vmatpush1.msra.mxu0 0.0
        %597 = vmatprep.subr.mxu0 0.0
        %598 = vmatpush1.msra.mxu0 0.0
        %599 = vmatprep.subr.mxu0 0.0
        %600 = vmatpush1.msra.mxu0 0.0
        %601 = vmatprep.subr.mxu0 0.0
        %602 = vmatpush1.msra.mxu0 0.0
        %603 = vmatprep.subr.mxu0 0.0
        %604 = vmatpush1.msra.mxu0 0.0
        %605 = vmatprep.mubr.f32.mxu0 0.0
        %606 = vmatmul.mubr.f32.gmra.mrb[0].mxu0 %v494
        %v607 = vpop.f32.mrb[0].mxu0
        %v608 = vadd.f32 0.0, %v607
        %v609 = vpop.f32.mrb[0].mxu0
        %610 = vmatprep.mubr.f32.mxu0 0.0
        %611 = vmatmul.mubr.f32.gmra.mrb[0].mxu0 %v497
        %v612 = vpop.f32.mrb[0].mxu0
        %v613 = vadd.f32 0.0, %v612
        %v614 = vpop.f32.mrb[0].mxu0
        %615 = vmatprep.mubr.f32.mxu0 0.0
        %616 = vmatmul.mubr.f32.gmra.mrb[0].mxu0 %v500
        %v617 = vpop.f32.mrb[0].mxu0
        %v618 = vadd.f32 0.0, %v617
        %v619 = vpop.f32.mrb[0].mxu0
        %620 = vmatprep.mubr.f32.mxu0 0.0
        %621 = vmatmul.mubr.f32.gmra.mrb[0].mxu0 %v503
        %v622 = vpop.f32.mrb[0].mxu0
        %v623 = vadd.f32 0.0, %v622
        %v624 = vpop.f32.mrb[0].mxu0
        %625 = vmatprep.mubr.f32.mxu0 0.0
        %626 = vmatmul.mubr.f32.gmra.mrb[0].mxu0 %v506
        %v627 = vpop.f32.mrb[0].mxu0
        %v628 = vadd.f32 0.0, %v627
        %v629 = vpop.f32.mrb[0].mxu0
        %630 = vmatprep.mubr.f32.mxu0 0.0
        %631 = vmatmul.mubr.f32.gmra.mrb[0].mxu0 %v509
        %v632 = vpop.f32.mrb[0].mxu0
        %v633 = vadd.f32 0.0, %v632
        %v634 = vpop.f32.mrb[0].mxu0
        %635 = vmatprep.mubr.f32.mxu0 0.0
        %636 = vmatmul.mubr.f32.gmra.mrb[0].mxu0 %v512
        %v637 = vpop.f32.mrb[0].mxu0
        %v638 = vadd.f32 0.0, %v637
        %v639 = vpop.f32.mrb[0].mxu0
        %640 = vmatprep.mubr.f32.mxu0 0.0
        %641 = vmatmul.mubr.f32.gmra.mrb[0].mxu0 %v515
        %v642 = vpop.f32.mrb[0].mxu0
        %v643 = vadd.f32 0.0, %v642
        %v644 = vpop.f32.mrb[0].mxu0
        %645 = vmatprep.mubr.f32.mxu0 0.0
        %646 = vmatmul.mubr.f32.gmra.mrb[0].mxu0 %v518
        %v647 = vpop.f32.mrb[0].mxu0
        %v648 = vadd.f32 0.0, %v647
        %v649 = vpop.f32.mrb[0].mxu0
        %650 = vmatprep.mubr.f32.mxu0 0.0
        %651 = vmatmul.mubr.f32.gmra.mrb[0].mxu0 %v521
        %v652 = vpop.f32.mrb[0].mxu0
        %v653 = vadd.f32 0.0, %v652
        %v654 = vpop.f32.mrb[0].mxu0
        %655 = vmatprep.mubr.f32.mxu0 0.0
        %656 = vmatmul.mubr.f32.gmra.mrb[0].mxu0 %v524
        %v657 = vpop.f32.mrb[0].mxu0
        %v658 = vadd.f32 0.0, %v657
        %v659 = vpop.f32.mrb[0].mxu0
        %660 = vmatprep.mubr.f32.mxu0 0.0
        %661 = vmatmul.mubr.f32.gmra.mrb[0].mxu0 %v527
        %v662 = vpop.f32.mrb[0].mxu0
        %v663 = vadd.f32 0.0, %v662
        %v664 = vpop.f32.mrb[0].mxu0
        %665 = vmatprep.mubr.f32.mxu0 0.0
        %666 = vmatmul.mubr.f32.gmra.mrb[0].mxu0 %v530
        %v667 = vpop.f32.mrb[0].mxu0
        %v668 = vadd.f32 0.0, %v667
        %v669 = vpop.f32.mrb[0].mxu0
        %670 = vmatprep.mubr.f32.mxu0 0.0
        %671 = vmatmul.mubr.f32.gmra.mrb[0].mxu0 %v533
        %v672 = vpop.f32.mrb[0].mxu0
        %v673 = vadd.f32 0.0, %v672
        %v674 = vpop.f32.mrb[0].mxu0
        %675 = vmatprep.mubr.f32.mxu0 0.0
        %676 = vmatmul.mubr.f32.gmra.mrb[0].mxu0 %v536
        %v677 = vpop.f32.mrb[0].mxu0
        %v678 = vadd.f32 0.0, %v677
        %v679 = vpop.f32.mrb[0].mxu0
        %680 = vmatprep.mubr.f32.mxu0 0.0
        %681 = vmatmul.mubr.f32.gmra.mrb[0].mxu0 %v539
        %v682 = vpop.f32.mrb[0].mxu0
        %v683 = vadd.f32 0.0, %v682
        %v684 = vpop.f32.mrb[0].mxu0
        %685 = vdwg.mxu0
        %v686 = vld [vmem:[%s2] sm:$0xff]
        %v687 = vld [vmem:[%s2 + $0x8] sm:$0xff]
        %v688 = vld [vmem:[%s2 + $0x10] sm:$0xff]
        %v689 = vld [vmem:[%s2 + $0x18] sm:$0xff]
        %v690 = vld [vmem:[%s2 + $0x20] sm:$0xff]
        %v691 = vld [vmem:[%s2 + $0x28] sm:$0xff]
        %v692 = vld [vmem:[%s2 + $0x30] sm:$0xff]
        %v693 = vld [vmem:[%s2 + $0x38] sm:$0xff]
        %v694 = vld [vmem:[%s2 + $0x40] sm:$0xff]
        %v695 = vld [vmem:[%s2 + $0x48] sm:$0xff]
        %v696 = vld [vmem:[%s2 + $0x50] sm:$0xff]
        %v697 = vld [vmem:[%s2 + $0x58] sm:$0xff]
        %v698 = vld [vmem:[%s2 + $0x60] sm:$0xff]
        %v699 = vld [vmem:[%s2 + $0x68] sm:$0xff]
        %v700 = vld [vmem:[%s2 + $0x70] sm:$0xff]
        %v701 = vld [vmem:[%s2 + $0x78] sm:$0xff]
        %v703 = vsel %vm347, %v686, 0
        %v706 = vsel %vm347, %v687, 0
        %v709 = vsel %vm347, %v688, 0
        %v712 = vsel %vm347, %v689, 0
        %v715 = vsel %vm347, %v690, 0
        %v718 = vsel %vm347, %v691, 0
        %v721 = vsel %vm347, %v692, 0
        %v724 = vsel %vm347, %v693, 0
        %v727 = vsel %vm347, %v694, 0
        %v730 = vsel %vm347, %v695, 0
        %v733 = vsel %vm347, %v696, 0
        %v736 = vsel %vm347, %v697, 0
        %v739 = vsel %vm347, %v698, 0
        %v742 = vsel %vm347, %v699, 0
        %v745 = vsel %vm347, %v700, 0
        %v748 = vsel %vm347, %v701, 0
        %750 = vmatprep.subr.mxu0 0.0
        %751 = vmatpush1.msra.mxu0 %v335
        %752 = vmatprep.subr.mxu0 0.0
        %753 = vmatpush1.msra.mxu0 %v336
        %754 = vmatprep.subr.mxu0 0.0
        %755 = vmatpush1.msra.mxu0 %v337
        %756 = vmatprep.subr.mxu0 0.0
        %757 = vmatpush1.msra.mxu0 %v338
        %758 = vmatprep.subr.mxu0 0.0
        %759 = vmatpush1.msra.mxu0 0.0
        %760 = vmatprep.subr.mxu0 0.0
        %761 = vmatpush1.msra.mxu0 0.0
        %762 = vmatprep.subr.mxu0 0.0
        %763 = vmatpush1.msra.mxu0 0.0
        %764 = vmatprep.subr.mxu0 0.0
        %765 = vmatpush1.msra.mxu0 0.0
        %766 = vmatprep.subr.mxu0 0.0
        %767 = vmatpush1.msra.mxu0 0.0
        %768 = vmatprep.subr.mxu0 0.0
        %769 = vmatpush1.msra.mxu0 0.0
        %770 = vmatprep.subr.mxu0 0.0
        %771 = vmatpush1.msra.mxu0 0.0
        %772 = vmatprep.subr.mxu0 0.0
        %773 = vmatpush1.msra.mxu0 0.0
        %774 = vmatprep.subr.mxu0 0.0
        %775 = vmatpush1.msra.mxu0 0.0
        %776 = vmatprep.subr.mxu0 0.0
        %777 = vmatpush1.msra.mxu0 0.0
        %778 = vmatprep.subr.mxu0 0.0
        %779 = vmatpush1.msra.mxu0 0.0
        %780 = vmatprep.subr.mxu0 0.0
        %781 = vmatpush1.msra.mxu0 0.0
        %782 = vmatprep.subr.mxu0 0.0
        %783 = vmatpush1.msra.mxu0 0.0
        %784 = vmatprep.subr.mxu0 0.0
        %785 = vmatpush1.msra.mxu0 0.0
        %786 = vmatprep.subr.mxu0 0.0
        %787 = vmatpush1.msra.mxu0 0.0
        %788 = vmatprep.subr.mxu0 0.0
        %789 = vmatpush1.msra.mxu0 0.0
        %790 = vmatprep.subr.mxu0 0.0
        %791 = vmatpush1.msra.mxu0 0.0
        %792 = vmatprep.subr.mxu0 0.0
        %793 = vmatpush1.msra.mxu0 0.0
        %794 = vmatprep.subr.mxu0 0.0
        %795 = vmatpush1.msra.mxu0 0.0
        %796 = vmatprep.subr.mxu0 0.0
        %797 = vmatpush1.msra.mxu0 0.0
        %798 = vmatprep.subr.mxu0 0.0
        %799 = vmatpush1.msra.mxu0 0.0
        %800 = vmatprep.subr.mxu0 0.0
        %801 = vmatpush1.msra.mxu0 0.0
        %802 = vmatprep.subr.mxu0 0.0
        %803 = vmatpush1.msra.mxu0 0.0
        %804 = vmatprep.subr.mxu0 0.0
        %805 = vmatpush1.msra.mxu0 0.0
        %806 = vmatprep.subr.mxu0 0.0
        %807 = vmatpush1.msra.mxu0 0.0
        %808 = vmatprep.subr.mxu0 0.0
        %809 = vmatpush1.msra.mxu0 0.0
        %810 = vmatprep.subr.mxu0 0.0
        %811 = vmatpush1.msra.mxu0 0.0
        %812 = vmatprep.subr.mxu0 0.0
        %813 = vmatpush1.msra.mxu0 0.0
        %814 = vmatprep.mubr.f32.mxu0 0.0
        %815 = vmatmul.mubr.f32.gmra.mrb[0].mxu0 %v703
        %v816 = vpop.f32.mrb[0].mxu0
        %v817 = vadd.f32 0.0, %v816
        %v818 = vpop.f32.mrb[0].mxu0
        %819 = vmatprep.mubr.f32.mxu0 0.0
        %820 = vmatmul.mubr.f32.gmra.mrb[0].mxu0 %v706
        %v821 = vpop.f32.mrb[0].mxu0
        %v822 = vadd.f32 0.0, %v821
        %v823 = vpop.f32.mrb[0].mxu0
        %824 = vmatprep.mubr.f32.mxu0 0.0
        %825 = vmatmul.mubr.f32.gmra.mrb[0].mxu0 %v709
        %v826 = vpop.f32.mrb[0].mxu0
        %v827 = vadd.f32 0.0, %v826
        %v828 = vpop.f32.mrb[0].mxu0
        %829 = vmatprep.mubr.f32.mxu0 0.0
        %830 = vmatmul.mubr.f32.gmra.mrb[0].mxu0 %v712
        %v831 = vpop.f32.mrb[0].mxu0
        %v832 = vadd.f32 0.0, %v831
        %v833 = vpop.f32.mrb[0].mxu0
        %834 = vmatprep.mubr.f32.mxu0 0.0
        %835 = vmatmul.mubr.f32.gmra.mrb[0].mxu0 %v715
        %v836 = vpop.f32.mrb[0].mxu0
        %v837 = vadd.f32 0.0, %v836
        %v838 = vpop.f32.mrb[0].mxu0
        %839 = vmatprep.mubr.f32.mxu0 0.0
        %840 = vmatmul.mubr.f32.gmra.mrb[0].mxu0 %v718
        %v841 = vpop.f32.mrb[0].mxu0
        %v842 = vadd.f32 0.0, %v841
        %v843 = vpop.f32.mrb[0].mxu0
        %844 = vmatprep.mubr.f32.mxu0 0.0
        %845 = vmatmul.mubr.f32.gmra.mrb[0].mxu0 %v721
        %v846 = vpop.f32.mrb[0].mxu0
        %v847 = vadd.f32 0.0, %v846
        %v848 = vpop.f32.mrb[0].mxu0
        %849 = vmatprep.mubr.f32.mxu0 0.0
        %850 = vmatmul.mubr.f32.gmra.mrb[0].mxu0 %v724
        %v851 = vpop.f32.mrb[0].mxu0
        %v852 = vadd.f32 0.0, %v851
        %v853 = vpop.f32.mrb[0].mxu0
        %854 = vmatprep.mubr.f32.mxu0 0.0
        %855 = vmatmul.mubr.f32.gmra.mrb[0].mxu0 %v727
        %v856 = vpop.f32.mrb[0].mxu0
        %v857 = vadd.f32 0.0, %v856
        %v858 = vpop.f32.mrb[0].mxu0
        %859 = vmatprep.mubr.f32.mxu0 0.0
        %860 = vmatmul.mubr.f32.gmra.mrb[0].mxu0 %v730
        %v861 = vpop.f32.mrb[0].mxu0
        %v862 = vadd.f32 0.0, %v861
        %v863 = vpop.f32.mrb[0].mxu0
        %864 = vmatprep.mubr.f32.mxu0 0.0
        %865 = vmatmul.mubr.f32.gmra.mrb[0].mxu0 %v733
        %v866 = vpop.f32.mrb[0].mxu0
        %v867 = vadd.f32 0.0, %v866
        %v868 = vpop.f32.mrb[0].mxu0
        %869 = vmatprep.mubr.f32.mxu0 0.0
        %870 = vmatmul.mubr.f32.gmra.mrb[0].mxu0 %v736
        %v871 = vpop.f32.mrb[0].mxu0
        %v872 = vadd.f32 0.0, %v871
        %v873 = vpop.f32.mrb[0].mxu0
        %874 = vmatprep.mubr.f32.mxu0 0.0
        %875 = vmatmul.mubr.f32.gmra.mrb[0].mxu0 %v739
        %v876 = vpop.f32.mrb[0].mxu0
        %v877 = vadd.f32 0.0, %v876
        %v878 = vpop.f32.mrb[0].mxu0
        %879 = vmatprep.mubr.f32.mxu0 0.0
        %880 = vmatmul.mubr.f32.gmra.mrb[0].mxu0 %v742
        %v881 = vpop.f32.mrb[0].mxu0
        %v882 = vadd.f32 0.0, %v881
        %v883 = vpop.f32.mrb[0].mxu0
        %884 = vmatprep.mubr.f32.mxu0 0.0
        %885 = vmatmul.mubr.f32.gmra.mrb[0].mxu0 %v745
        %v886 = vpop.f32.mrb[0].mxu0
        %v887 = vadd.f32 0.0, %v886
        %v888 = vpop.f32.mrb[0].mxu0
        %889 = vmatprep.mubr.f32.mxu0 0.0
        %890 = vmatmul.mubr.f32.gmra.mrb[0].mxu0 %v748
        %v891 = vpop.f32.mrb[0].mxu0
        %v892 = vadd.f32 0.0, %v891
        %v893 = vpop.f32.mrb[0].mxu0
        %894 = vdwg.mxu0
        %vm895 = vcmask 64512
        %v897 = vsel %vm895, %v439, 0
        %v900 = vsel %vm895, %v444, 0
        %v903 = vsel %vm895, %v449, 0
        %v906 = vsel %vm895, %v454, 0
        %v909 = vsel %vm895, %v459, 0
        %v912 = vsel %vm895, %v464, 0
        %v915 = vsel %vm895, %v469, 0
        %v918 = vsel %vm895, %v474, 0
        %v921 = vsel %vm895, %v608, 0
        %v924 = vsel %vm895, %v613, 0
        %v927 = vsel %vm895, %v618, 0
        %v930 = vsel %vm895, %v623, 0
        %v933 = vsel %vm895, %v628, 0
        %v936 = vsel %vm895, %v633, 0
        %v939 = vsel %vm895, %v638, 0
        %v942 = vsel %vm895, %v643, 0
        %v945 = vsel %vm895, %v648, 0
        %v948 = vsel %vm895, %v653, 0
        %v951 = vsel %vm895, %v658, 0
        %v954 = vsel %vm895, %v663, 0
        %v957 = vsel %vm895, %v668, 0
        %v960 = vsel %vm895, %v673, 0
        %v963 = vsel %vm895, %v678, 0
        %v966 = vsel %vm895, %v683, 0
        %968 = vmatprep.subr.mxu0 0.0
        %969 = vmatpush1.xpose.msra.mxu0 %v921
        %970 = vmatprep.subr.mxu0 0.0
        %971 = vmatpush1.xpose.msra.mxu0 %v924
        %972 = vmatprep.subr.mxu0 0.0
        %973 = vmatpush1.xpose.msra.mxu0 %v927
        %974 = vmatprep.subr.mxu0 0.0
        %975 = vmatpush1.xpose.msra.mxu0 %v930
        %976 = vmatprep.subr.mxu0 0.0
        %977 = vmatpush1.xpose.msra.mxu0 %v933
        %978 = vmatprep.subr.mxu0 0.0
        %979 = vmatpush1.xpose.msra.mxu0 %v936
        %980 = vmatprep.subr.mxu0 0.0
        %981 = vmatpush1.xpose.msra.mxu0 %v939
        %982 = vmatprep.subr.mxu0 0.0
        %983 = vmatpush1.xpose.msra.mxu0 %v942
        %984 = vmatprep.subr.mxu0 0.0
        %985 = vmatpush1.xpose.msra.mxu0 %v945
        %986 = vmatprep.subr.mxu0 0.0
        %987 = vmatpush1.xpose.msra.mxu0 %v948
        %988 = vmatprep.subr.mxu0 0.0
        %989 = vmatpush1.xpose.msra.mxu0 %v951
        %990 = vmatprep.subr.mxu0 0.0
        %991 = vmatpush1.xpose.msra.mxu0 %v954
        %992 = vmatprep.subr.mxu0 0.0
        %993 = vmatpush1.xpose.msra.mxu0 %v957
        %994 = vmatprep.subr.mxu0 0.0
        %995 = vmatpush1.xpose.msra.mxu0 %v960
        %996 = vmatprep.subr.mxu0 0.0
        %997 = vmatpush1.xpose.msra.mxu0 %v963
        %998 = vmatprep.subr.mxu0 0.0
        %999 = vmatpush1.xpose.msra.mxu0 %v966
        %1000 = vmatprep.subr.mxu0 0.0
        %1001 = vmatpush1.xpose.msra.mxu0 0.0
        %1002 = vmatprep.subr.mxu0 0.0
        %1003 = vmatpush1.xpose.msra.mxu0 0.0
        %1004 = vmatprep.subr.mxu0 0.0
        %1005 = vmatpush1.xpose.msra.mxu0 0.0
        %1006 = vmatprep.subr.mxu0 0.0
        %1007 = vmatpush1.xpose.msra.mxu0 0.0
        %1008 = vmatprep.subr.mxu0 0.0
        %1009 = vmatpush1.xpose.msra.mxu0 0.0
        %1010 = vmatprep.subr.mxu0 0.0
        %1011 = vmatpush1.xpose.msra.mxu0 0.0
        %1012 = vmatprep.subr.mxu0 0.0
        %1013 = vmatpush1.xpose.msra.mxu0 0.0
        %1014 = vmatprep.subr.mxu0 0.0
        %1015 = vmatpush1.xpose.msra.mxu0 0.0
        %1016 = vmatprep.subr.mxu0 0.0
        %1017 = vmatpush1.xpose.msra.mxu0 0.0
        %1018 = vmatprep.subr.mxu0 0.0
        %1019 = vmatpush1.xpose.msra.mxu0 0.0
        %1020 = vmatprep.subr.mxu0 0.0
        %1021 = vmatpush1.xpose.msra.mxu0 0.0
        %1022 = vmatprep.subr.mxu0 0.0
        %1023 = vmatpush1.xpose.msra.mxu0 0.0
        %1024 = vmatprep.subr.mxu0 0.0
        %1025 = vmatpush1.xpose.msra.mxu0 0.0
        %1026 = vmatprep.subr.mxu0 0.0
        %1027 = vmatpush1.xpose.msra.mxu0 0.0
        %1028 = vmatprep.subr.mxu0 0.0
        %1029 = vmatpush1.xpose.msra.mxu0 0.0
        %1030 = vmatprep.subr.mxu0 0.0
        %1031 = vmatpush1.xpose.msra.mxu0 0.0
        %1032 = vmatprep.mubr.f32.mxu0 0.0
        %1033 = vmatmul.mubr.f32.gmra.mrb[0].mxu0 %v897
        %v1034 = vpop.f32.mrb[0].mxu0
        %v1035 = vadd.f32 0.0, %v1034
        %v1036 = vpop.f32.mrb[0].mxu0
        %1037 = vmatprep.mubr.f32.mxu0 0.0
        %1038 = vmatmul.mubr.f32.gmra.mrb[0].mxu0 %v900
        %v1039 = vpop.f32.mrb[0].mxu0
        %v1040 = vadd.f32 0.0, %v1039
        %v1041 = vpop.f32.mrb[0].mxu0
        %1042 = vmatprep.mubr.f32.mxu0 0.0
        %1043 = vmatmul.mubr.f32.gmra.mrb[0].mxu0 %v903
        %v1044 = vpop.f32.mrb[0].mxu0
        %v1045 = vadd.f32 0.0, %v1044
        %v1046 = vpop.f32.mrb[0].mxu0
        %1047 = vmatprep.mubr.f32.mxu0 0.0
        %1048 = vmatmul.mubr.f32.gmra.mrb[0].mxu0 %v906
        %v1049 = vpop.f32.mrb[0].mxu0
        %v1050 = vadd.f32 0.0, %v1049
        %v1051 = vpop.f32.mrb[0].mxu0
        %1052 = vmatprep.mubr.f32.mxu0 0.0
        %1053 = vmatmul.mubr.f32.gmra.mrb[0].mxu0 %v909
        %v1054 = vpop.f32.mrb[0].mxu0
        %v1055 = vadd.f32 0.0, %v1054
        %v1056 = vpop.f32.mrb[0].mxu0
        %1057 = vmatprep.mubr.f32.mxu0 0.0
        %1058 = vmatmul.mubr.f32.gmra.mrb[0].mxu0 %v912
        %v1059 = vpop.f32.mrb[0].mxu0
        %v1060 = vadd.f32 0.0, %v1059
        %v1061 = vpop.f32.mrb[0].mxu0
        %1062 = vmatprep.mubr.f32.mxu0 0.0
        %1063 = vmatmul.mubr.f32.gmra.mrb[0].mxu0 %v915
        %v1064 = vpop.f32.mrb[0].mxu0
        %v1065 = vadd.f32 0.0, %v1064
        %v1066 = vpop.f32.mrb[0].mxu0
        %1067 = vmatprep.mubr.f32.mxu0 0.0
        %1068 = vmatmul.mubr.f32.gmra.mrb[0].mxu0 %v918
        %v1069 = vpop.f32.mrb[0].mxu0
        %v1070 = vadd.f32 0.0, %v1069
        %v1071 = vpop.f32.mrb[0].mxu0
        %1072 = vdwg.mxu0
        %1073 = vmax.xlane.f32.xlu0 %v1035
        %v1074 = vpop.xlane.xlu0 %1073
        %1075 = vmax.xlane.f32.xlu0 %v1040
        %v1076 = vpop.xlane.xlu0 %1075
        %1077 = vmax.xlane.f32.xlu0 %v1045
        %v1078 = vpop.xlane.xlu0 %1077
        %1079 = vmax.xlane.f32.xlu0 %v1050
        %v1080 = vpop.xlane.xlu0 %1079
        %1081 = vmax.xlane.f32.xlu0 %v1055
        %v1082 = vpop.xlane.xlu0 %1081
        %1083 = vmax.xlane.f32.xlu0 %v1060
        %v1084 = vpop.xlane.xlu0 %1083
        %1085 = vmax.xlane.f32.xlu0 %v1065
        %v1086 = vpop.xlane.xlu0 %1085
        %1087 = vmax.xlane.f32.xlu0 %v1070
        %v1088 = vpop.xlane.xlu0 %1087
        %v1089 = vsub.f32 %v1035, %v1074
        %v1090 = vsub.f32 %v1040, %v1076
        %v1091 = vsub.f32 %v1045, %v1078
        %v1092 = vsub.f32 %v1050, %v1080
        %v1093 = vsub.f32 %v1055, %v1082
        %v1094 = vsub.f32 %v1060, %v1084
        %v1095 = vsub.f32 %v1065, %v1086
        %v1096 = vsub.f32 %v1070, %v1088
        %v1097 = vmul.f32 %v1089, 1.442695
        %v1098 = vpow.pop %v1097
        %v1099 = vmul.f32 %v1090, 1.442695
        %v1100 = vpow.pop %v1099
        %v1101 = vmul.f32 %v1091, 1.442695
        %v1102 = vpow.pop %v1101
        %v1103 = vmul.f32 %v1092, 1.442695
        %v1104 = vpow.pop %v1103
        %v1105 = vmul.f32 %v1093, 1.442695
        %v1106 = vpow.pop %v1105
        %v1107 = vmul.f32 %v1094, 1.442695
        %v1108 = vpow.pop %v1107
        %v1109 = vmul.f32 %v1095, 1.442695
        %v1110 = vpow.pop %v1109
        %v1111 = vmul.f32 %v1096, 1.442695
        %v1112 = vpow.pop %v1111
        %1113 = vadd.xlane.f32.xlu0 %v1098
        %v1114 = vpop.xlane.xlu0 %1113
        %1115 = vadd.xlane.f32.xlu0 %v1100
        %v1116 = vpop.xlane.xlu0 %1115
        %1117 = vadd.xlane.f32.xlu0 %v1102
        %v1118 = vpop.xlane.xlu0 %1117
        %1119 = vadd.xlane.f32.xlu0 %v1104
        %v1120 = vpop.xlane.xlu0 %1119
        %1121 = vadd.xlane.f32.xlu0 %v1106
        %v1122 = vpop.xlane.xlu0 %1121
        %1123 = vadd.xlane.f32.xlu0 %v1108
        %v1124 = vpop.xlane.xlu0 %1123
        %1125 = vadd.xlane.f32.xlu0 %v1110
        %v1126 = vpop.xlane.xlu0 %1125
        %1127 = vadd.xlane.f32.xlu0 %v1112
        %v1128 = vpop.xlane.xlu0 %1127
        %v1129 = vrcp.pop %v1114
        %v1130 = vrcp.pop %v1116
        %v1131 = vrcp.pop %v1118
        %v1132 = vrcp.pop %v1120
        %v1133 = vrcp.pop %v1122
        %v1134 = vrcp.pop %v1124
        %v1135 = vrcp.pop %v1126
        %v1136 = vrcp.pop %v1128
        %v1137 = vmul.f32 %v1098, %v1129
        %v1138 = vmul.f32 %v1100, %v1130
        %v1139 = vmul.f32 %v1102, %v1131
        %v1140 = vmul.f32 %v1104, %v1132
        %v1141 = vmul.f32 %v1106, %v1133
        %v1142 = vmul.f32 %v1108, %v1134
        %v1143 = vmul.f32 %v1110, %v1135
        %v1144 = vmul.f32 %v1112, %v1136
        %1145 = vmatprep.subr.mxu0 0.0
        %1146 = vmatpush1.msra.mxu0 %v817
        %1147 = vmatprep.subr.mxu0 0.0
        %1148 = vmatpush1.msra.mxu0 %v822
        %1149 = vmatprep.subr.mxu0 0.0
        %1150 = vmatpush1.msra.mxu0 %v827
        %1151 = vmatprep.subr.mxu0 0.0
        %1152 = vmatpush1.msra.mxu0 %v832
        %1153 = vmatprep.subr.mxu0 0.0
        %1154 = vmatpush1.msra.mxu0 %v837
        %1155 = vmatprep.subr.mxu0 0.0
        %1156 = vmatpush1.msra.mxu0 %v842
        %1157 = vmatprep.subr.mxu0 0.0
        %1158 = vmatpush1.msra.mxu0 %v847
        %1159 = vmatprep.subr.mxu0 0.0
        %1160 = vmatpush1.msra.mxu0 %v852
        %1161 = vmatprep.subr.mxu0 0.0
        %1162 = vmatpush1.msra.mxu0 %v857
        %1163 = vmatprep.subr.mxu0 0.0
        %1164 = vmatpush1.msra.mxu0 %v862
        %1165 = vmatprep.subr.mxu0 0.0
        %1166 = vmatpush1.msra.mxu0 %v867
        %1167 = vmatprep.subr.mxu0 0.0
        %1168 = vmatpush1.msra.mxu0 %v872
        %1169 = vmatprep.subr.mxu0 0.0
        %1170 = vmatpush1.msra.mxu0 %v877
        %1171 = vmatprep.subr.mxu0 0.0
        %1172 = vmatpush1.msra.mxu0 %v882
        %1173 = vmatprep.subr.mxu0 0.0
        %1174 = vmatpush1.msra.mxu0 %v887
        %1175 = vmatprep.subr.mxu0 0.0
        %1176 = vmatpush1.msra.mxu0 %v892
        %1177 = vmatprep.subr.mxu0 0.0
        %1178 = vmatpush1.msra.mxu0 0.0
        %1179 = vmatprep.subr.mxu0 0.0
        %1180 = vmatpush1.msra.mxu0 0.0
        %1181 = vmatprep.subr.mxu0 0.0
        %1182 = vmatpush1.msra.mxu0 0.0
        %1183 = vmatprep.subr.mxu0 0.0
        %1184 = vmatpush1.msra.mxu0 0.0
        %1185 = vmatprep.subr.mxu0 0.0
        %1186 = vmatpush1.msra.mxu0 0.0
        %1187 = vmatprep.subr.mxu0 0.0
        %1188 = vmatpush1.msra.mxu0 0.0
        %1189 = vmatprep.subr.mxu0 0.0
        %1190 = vmatpush1.msra.mxu0 0.0
        %1191 = vmatprep.subr.mxu0 0.0
        %1192 = vmatpush1.msra.mxu0 0.0
        %1193 = vmatprep.subr.mxu0 0.0
        %1194 = vmatpush1.msra.mxu0 0.0
        %1195 = vmatprep.subr.mxu0 0.0
        %1196 = vmatpush1.msra.mxu0 0.0
        %1197 = vmatprep.subr.mxu0 0.0
        %1198 = vmatpush1.msra.mxu0 0.0
        %1199 = vmatprep.subr.mxu0 0.0
        %1200 = vmatpush1.msra.mxu0 0.0
        %1201 = vmatprep.subr.mxu0 0.0
        %1202 = vmatpush1.msra.mxu0 0.0
        %1203 = vmatprep.subr.mxu0 0.0
        %1204 = vmatpush1.msra.mxu0 0.0
        %1205 = vmatprep.subr.mxu0 0.0
        %1206 = vmatpush1.msra.mxu0 0.0
        %1207 = vmatprep.subr.mxu0 0.0
        %1208 = vmatpush1.msra.mxu0 0.0
        %1209 = vmatprep.mubr.f32.mxu0 0.0
        %1210 = vmatmul.mubr.f32.gmra.mrb[0].mxu0 %v1137
        %v1211 = vpop.f32.mrb[0].mxu0
        %v1212 = vadd.f32 0.0, %v1211
        %v1213 = vpop.f32.mrb[0].mxu0
        %1214 = vmatprep.mubr.f32.mxu0 0.0
        %1215 = vmatmul.mubr.f32.gmra.mrb[0].mxu0 %v1138
        %v1216 = vpop.f32.mrb[0].mxu0
        %v1217 = vadd.f32 0.0, %v1216
        %v1218 = vpop.f32.mrb[0].mxu0
        %1219 = vmatprep.mubr.f32.mxu0 0.0
        %1220 = vmatmul.mubr.f32.gmra.mrb[0].mxu0 %v1139
        %v1221 = vpop.f32.mrb[0].mxu0
        %v1222 = vadd.f32 0.0, %v1221
        %v1223 = vpop.f32.mrb[0].mxu0
        %1224 = vmatprep.mubr.f32.mxu0 0.0
        %1225 = vmatmul.mubr.f32.gmra.mrb[0].mxu0 %v1140
        %v1226 = vpop.f32.mrb[0].mxu0
        %v1227 = vadd.f32 0.0, %v1226
        %v1228 = vpop.f32.mrb[0].mxu0
        %1229 = vmatprep.mubr.f32.mxu0 0.0
        %1230 = vmatmul.mubr.f32.gmra.mrb[0].mxu0 %v1141
        %v1231 = vpop.f32.mrb[0].mxu0
        %v1232 = vadd.f32 0.0, %v1231
        %v1233 = vpop.f32.mrb[0].mxu0
        %1234 = vmatprep.mubr.f32.mxu0 0.0
        %1235 = vmatmul.mubr.f32.gmra.mrb[0].mxu0 %v1142
        %v1236 = vpop.f32.mrb[0].mxu0
        %v1237 = vadd.f32 0.0, %v1236
        %v1238 = vpop.f32.mrb[0].mxu0
        %1239 = vmatprep.mubr.f32.mxu0 0.0
        %1240 = vmatmul.mubr.f32.gmra.mrb[0].mxu0 %v1143
        %v1241 = vpop.f32.mrb[0].mxu0
        %v1242 = vadd.f32 0.0, %v1241
        %v1243 = vpop.f32.mrb[0].mxu0
        %1244 = vmatprep.mubr.f32.mxu0 0.0
        %1245 = vmatmul.mubr.f32.gmra.mrb[0].mxu0 %v1144
        %v1246 = vpop.f32.mrb[0].mxu0
        %v1247 = vadd.f32 0.0, %v1246
        %v1248 = vpop.f32.mrb[0].mxu0
        %1249 = vdwg.mxu0
        %v1250 = vmax.f32 %v1212, 0.0
        %v1251 = vmax.f32 %v1217, 0.0
        %v1252 = vmax.f32 %v1222, 0.0
        %v1253 = vmax.f32 %v1227, 0.0
        %v1254 = vmax.f32 %v1232, 0.0
        %v1255 = vmax.f32 %v1237, 0.0
        %v1256 = vmax.f32 %v1242, 0.0
        %v1257 = vmax.f32 %v1247, 0.0
        %1258 = vst [vmem:[%s292] sm:$0xff] %v1137
        %1259 = vst [vmem:[%s292 + $0x8] sm:$0xff] %v1138
        %1260 = vst [vmem:[%s292 + $0x10] sm:$0xff] %v1139
        %1261 = vst [vmem:[%s292 + $0x18] sm:$0xff] %v1140
        %1262 = vst [vmem:[%s292 + $0x20] sm:$0xff] %v1141
        %1263 = vst [vmem:[%s292 + $0x28] sm:$0xff] %v1142
        %1264 = vst [vmem:[%s292 + $0x30] sm:$0xff] %v1143
        %1265 = vst [vmem:[%s292 + $0x38] sm:$0xff] %v1144
        %vm1266 = vcmask 31744
        %1267 = vst.msk [vmem:[%s329] sm:$0xff] %vm1266, %v1250
        %1268 = vst.msk [vmem:[%s329 + $0x8] sm:$0xff] %vm1266, %v1251
        %1269 = vst.msk [vmem:[%s329 + $0x10] sm:$0xff] %vm1266, %v1252
        %1270 = vst.msk [vmem:[%s329 + $0x18] sm:$0xff] %vm1266, %v1253
        %1271 = vst.msk [vmem:[%s329 + $0x20] sm:$0xff] %vm1266, %v1254
        %1272 = vst.msk [vmem:[%s329 + $0x28] sm:$0xff] %vm1266, %v1255
        %1273 = vst.msk [vmem:[%s329 + $0x30] sm:$0xff] %vm1266, %v1256
        %1274 = vst.msk [vmem:[%s329 + $0x38] sm:$0xff] %vm1266, %v1257
        %s1275 = sand.u32 %s163, 1
        %s1276 = scalar_lea.sflag [#allocation3], %s1275
        %s1277 = sand.u32 %s163, 1
        %s1278 = smul.addr %s1277, 64
        %s1279 = scalar_lea.vmem [#allocation2], %s1278
        %s1280 = smul.u32 8, %s26
        %p1281 = scmp.lt.s32.totalorder %s25, 3
        %s1282 = scalar_select %p1281, %s25, 3
        %p1283 = scmp.lt.s32.totalorder %s1280, 15
        %s1284 = scalar_select %p1283, %s1280, 15
        %s1285 = smul.addr %s1282, 16
        %s1286 = sadd.s32 %s1284, %s1285
        %s1287 = smul.addr %s1286, 8
        %s1288 = scalar_lea.vmem %s6, %s1287
        // Predicated region
        $region41: #{tpu_custom_call.1} parent=39 // pred_check
          %p1289 = pneg %p173
        $region42: #{tpu_custom_call.1} parent=39 // pred_check_branch
          %1291 = sbr.rel (%p1289) target = $region44
        $region43: #{tpu_custom_call.1} parent=39 // pred_region
          %s1292 = smul.u32 8, %s26
          %s1294 = ssub.s32 1024, 1024
          %1295 = vsyncadd %s1276, %s1294
          %s1296 = smul.addr %s25, 16
          %s1297 = sadd.s32 %s1292, %s1296
          %s1298 = smul.addr %s1297, 128
          %s1299 = scalar_lea.hbm %s5, %s1298
          %s1300 = sshll.u32 %s1279, 4
          %s1301 = int_to_ptr.vmem [resolvable:$true] %s1300
          %1306 = dma.vmem_to_hbm [thread:$0]  %s1301, 1024, %s1299, %s1276, 128, 128, 8
        $region44: #{tpu_custom_call.1} parent=39 // pred_fallthru
          _
        // Predicated region
        $region45: #{tpu_custom_call.1} parent=39 // pred_check
          %p1307 = pneg %p201
        $region46: #{tpu_custom_call.1} parent=39 // pred_check_branch
          %1309 = sbr.rel (%p1307) target = $region48
        $region47: #{tpu_custom_call.1} parent=39 // pred_region
          %s1310 = smul.u32 8, %s26
        $region48: #{tpu_custom_call.1} parent=39 // pred_fallthru
          _
      $region40: #{tpu_custom_call.1} parent=5 // pred_fallthru
        _
      %p1311 = scmp.le.s32.totalorder 2, %s16
      // Predicated region
      $region49: #{tpu_custom_call.1} parent=5 // pred_check
        %p1312 = pneg %p1311
      $region50: #{tpu_custom_call.1} parent=5 // pred_check_branch
        %1314 = sbr.rel (%p1312) target = $region52
      $region51: #{tpu_custom_call.1} parent=5 // pred_region
        %s1315 = ssub.s32 %s16, 2
        // Predicated region
        $region53: #{tpu_custom_call.1} parent=51 // pred_check
          %p1316 = pneg %p179
        $region54: #{tpu_custom_call.1} parent=51 // pred_check_branch
          %1318 = sbr.rel (%p1316) target = $region56
        $region55: #{tpu_custom_call.1} parent=51 // pred_region
          %s1319 = sand.u32 %s164, 1
          %s1320 = scalar_lea.sflag [#allocation3], %s1319
          %s1321 = sand.u32 %s164, 1
          %s1322 = smul.addr %s1321, 64
          %s1323 = scalar_lea.vmem [#allocation2], %s1322
          %1324 = dma.done %s1320, 1024
        $region56: #{tpu_custom_call.1} parent=51 // pred_fallthru
          _
        // Predicated region
        $region57: #{tpu_custom_call.1} parent=51 // pred_check
          %p1325 = pneg %p207
        $region58: #{tpu_custom_call.1} parent=51 // pred_check_branch
          %1327 = sbr.rel (%p1325) target = $region60
        $region59: #{tpu_custom_call.1} parent=51 // pred_region
          %s1328 = smul.u32 8, %s28
          %p1329 = scmp.lt.s32.totalorder %s27, 3
          %s1330 = scalar_select %p1329, %s27, 3
          %p1331 = scmp.lt.s32.totalorder %s1328, 15
          %s1332 = scalar_select %p1331, %s1328, 15
          %s1333 = smul.addr %s1330, 16
          %s1334 = sadd.s32 %s1332, %s1333
          %s1335 = smul.addr %s1334, 8
          %s1336 = scalar_lea.vmem %s6, %s1335
        $region60: #{tpu_custom_call.1} parent=51 // pred_fallthru
          _
      $region52: #{tpu_custom_call.1} parent=5 // pred_fallthru
        _
    $region6: #{tpu_custom_call.1} parent=1 // loop_footer
      %s20 = sadd.s32 1, %s16
    $region7: #{tpu_custom_call.1} parent=1 // loop_footer_branch
      %15 = sbr.rel target = $region3
    $region8: #{tpu_custom_call.1} parent=1 // loop_exit
      _
    %1337 = vsyncpa [#allocation3], 1
    %s1338 = scalar_lea.sflag [#allocation3], 1
    %1339 = vsyncpa %s1338, 1

</llo_original>
